<compile_context>
chip_gen: v7x
topology: tpu7x:2x2x1
jax: 0.10.0
libtpu: 0.0.40
codegen_flags: <defaults>
</compile_context>

<pallas_src>
import functools

import jax
import jax.numpy as jnp
from jax import lax
from jax.experimental import pallas as pl
from jax.experimental.pallas import tpu as pltpu

_LANE = 128


def _round_up(v, m):
    return (v + m - 1) // m * m


def _kernel(L, compute_dtype,
            x_ref, w1_ref, b1_ref, w2_ref, b2_ref, o_ref, h_ref):
    rows = x_ref.shape[0]          # tb * L flattened rows
    hp = h_ref.shape[1]            # lane-padded hidden width
    coutp = b2_ref.shape[1]        # lane-padded output width
    cout = o_ref.shape[1]

    # Boundary masks, hoisted once and reused by both conv layers.
    pos = lax.broadcasted_iota(jnp.int32, (rows, 1), 0) % L
    not_first = pos != 0           # zero the "prev" tap at l == 0
    not_last = pos != (L - 1)      # zero the "next" tap at l == L-1

    def conv_relu(inp, w_ref, b_ref, n):
        # inp: (rows, K) compute_dtype; w_ref: (K, 3*n) = [w0 | w1 | w2].
        # One MXU matmul, then combine the lane-aligned output slabs:
        #   y[l] = (x@w0)[l-1] + (x@w1)[l] + (x@w2)[l+1]   (zeros at seq edges)
        p = jnp.dot(inp, w_ref[...], preferred_element_type=jnp.float32)
        p_prev = p[:, 0:n]
        p_cur = p[:, n:2 * n]
        p_next = p[:, 2 * n:3 * n]
        prev = jnp.where(not_first,
                         pltpu.roll(p_prev, shift=1 % rows, axis=0), 0.0)
        nxt = jnp.where(not_last,
                        pltpu.roll(p_next, shift=(rows - 1) % rows, axis=0), 0.0)
        y = p_cur + prev + nxt + b_ref[...]
        return jnp.maximum(y, 0.0)

    x = x_ref[...].astype(compute_dtype)
    # Layer 1 (Cin -> Hp), staged in a lane-dense compute-dtype VMEM scratch.
    h_ref[...] = conv_relu(x, w1_ref, b1_ref, hp).astype(compute_dtype)
    # Layer 2 (Hp -> Coutp).
    y = conv_relu(h_ref[...], w2_ref, b2_ref, coutp)
    o_ref[...] = y[:, :cout].astype(o_ref.dtype)


def cnn_decoder(x, w1, b1, w2, b2, *, compute_dtype=jnp.bfloat16,
                vmem_budget_bytes=None):
    """x: (B, L, Cin).  w1: (3, Cin, H), b1: (H,)|(1,H),
    w2: (3, H, Cout), b2: (Cout,)|(1,Cout).
    Returns (B, L, Cout) in x.dtype — same math as CNNDecoder.forward
    (channels-last view of Conv1d(k=3, padding=1) + ReLU, twice)."""
    B, L, Cin = x.shape
    H = w1.shape[2]
    Cout = w2.shape[2]
    Hp = _round_up(H, _LANE)
    Coutp = _round_up(Cout, _LANE)
    esize = jnp.dtype(compute_dtype).itemsize

    # ---- weight prep: pad hidden/out channels to lane-dense widths and stack
    # the three taps side by side -> one matmul per conv layer.
    w1p = jnp.pad(w1, ((0, 0), (0, 0), (0, Hp - H)))
    w1c = jnp.concatenate([w1p[0], w1p[1], w1p[2]], axis=-1).astype(compute_dtype)   # (Cin, 3*Hp)
    w2p = jnp.pad(w2, ((0, 0), (0, Hp - H), (0, Coutp - Cout)))
    w2c = jnp.concatenate([w2p[0], w2p[1], w2p[2]], axis=-1).astype(compute_dtype)   # (Hp, 3*Coutp)
    b1p = jnp.pad(jnp.reshape(b1, (1, H)), ((0, 0), (0, Hp - H))).astype(jnp.float32)
    b2p = jnp.pad(jnp.reshape(b2, (1, Cout)), ((0, 0), (0, Coutp - Cout))).astype(jnp.float32)

    # ---- VMEM sizing: physical capacity from the chip, budget a fraction of
    # it, lane-padded per-row accounting (double-buffered blocks, h scratch,
    # f32 matmul results, rolled slabs, casts, masks).
    phys = 64 << 20
    try:
        phys = int(getattr(pltpu.get_tpu_info(), "vmem_capacity_bytes", phys))
    except Exception:
        pass
    vmem_limit_bytes = int(max(min(phys * 3 // 4, 100 << 20), 32 << 20))
    if vmem_budget_bytes is None:
        vmem_budget_bytes = int(min(max(phys // 3, 12 << 20), 48 << 20))
    vmem_budget_bytes = min(vmem_budget_bytes, vmem_limit_bytes * 3 // 4)

    xpad = _round_up(Cin, _LANE)                   # input block lane-pads to 128
    per_row = (2 * 4 * xpad                        # input block, f32, double-buffered
               + 2 * 4 * _round_up(Cout, _LANE)    # output block, f32, double-buffered
               + esize * Hp                        # h scratch (compute dtype)
               + esize * xpad                      # x cast
               + 4 * 3 * Hp + 4 * 2 * Hp           # layer-1 f32 result + rolled slabs
               + 4 * 3 * Coutp + 4 * 2 * Coutp     # layer-2 f32 result + rolled slabs
               + 4 * 2 * _LANE)                    # masks / misc
    weight_bytes = 2 * esize * (Cin * 3 * Hp + Hp * 3 * Coutp) + 2 * 4 * (Hp + Coutp)
    per_b = L * per_row
    tb_cap = max(1, (vmem_budget_bytes - weight_bytes) // per_b)

    # ---- batch tile: largest divisor of B that fits the budget, keeps the
    # sublane rule ((tb*L) % 8 == 0 unless tb == B), and leaves >= 2 grid
    # steps when B >= 2 (dual TensorCore on v7x).  No batch padding needed.
    candidates = [d for d in range(1, B + 1)
                  if B % d == 0 and (d == B or (d * L) % 8 == 0)]
    fitting = [d for d in candidates if d <= tb_cap and (B == 1 or d < B)]
    tb = max(fitting) if fitting else min(candidates)
    nb = B // tb

    # ---- flatten (B, L, C) -> (B*L, C) outside the kernel (free reshape).
    xf = x.reshape(B * L, Cin)

    out = pl.pallas_call(
        functools.partial(_kernel, L, compute_dtype),
        out_shape=jax.ShapeDtypeStruct((B * L, Cout), x.dtype),
        grid_spec=pltpu.PrefetchScalarGridSpec(
            num_scalar_prefetch=0,
            grid=(nb,),
            in_specs=[
                pl.BlockSpec((tb * L, Cin), lambda b: (b, 0)),
                pl.BlockSpec((Cin, 3 * Hp), lambda b: (0, 0)),     # resident weights
                pl.BlockSpec((1, Hp), lambda b: (0, 0)),
                pl.BlockSpec((Hp, 3 * Coutp), lambda b: (0, 0)),
                pl.BlockSpec((1, Coutp), lambda b: (0, 0)),
            ],
            out_specs=pl.BlockSpec((tb * L, Cout), lambda b: (b, 0)),
            scratch_shapes=[pltpu.VMEM((tb * L, Hp), compute_dtype)],
        ),
        compiler_params=pltpu.CompilerParams(
            dimension_semantics=("parallel",),
            vmem_limit_bytes=vmem_limit_bytes),
    )(xf, w1c, b1p, w2c, b2p)

    return out.reshape(B, L, Cout)


def _reference(x, w1, b1, w2, b2):
    """Pure-JAX reference of the same math (channels-last conv1d, pad=1)."""
    def conv(inp, w, b):
        pad = jnp.pad(inp, ((0, 0), (1, 1), (0, 0)))
        y = (pad[:, :-2, :] @ w[0] + pad[:, 1:-1, :] @ w[1]
             + pad[:, 2:, :] @ w[2] + jnp.reshape(b, (1, 1, -1)))
        return jnp.maximum(y, 0.0)
    return conv(conv(x, w1, b1), w2, b2)


if __name__ == "__main__":
    # Shapes consistent with the module defaults: in=16, hidden=64, out=128, k=3.
    B, L = 2, 8
    C_IN, HID, C_OUT = 16, 64, 128

    key = jax.random.PRNGKey(0)
    kx, kw1, kb1, kw2, kb2 = jax.random.split(key, 5)

    x = jax.random.normal(kx, (B, L, C_IN), dtype=jnp.float32)
    # Conv1d params stored channels-last: (k, Cin, Cout) = torch (Cout, Cin, k) transposed.
    w1 = jax.random.normal(kw1, (3, C_IN, HID), dtype=jnp.float32) * 0.1
    b1 = jax.random.normal(kb1, (HID,), dtype=jnp.float32) * 0.1
    w2 = jax.random.normal(kw2, (3, HID, C_OUT), dtype=jnp.float32) * 0.1
    b2 = jax.random.normal(kb2, (C_OUT,), dtype=jnp.float32) * 0.1

    ref = _reference(x, w1, b1, w2, b2)

    # Exact-path check (f32 MXU compute).
    out_f32 = jax.block_until_ready(
        cnn_decoder(x, w1, b1, w2, b2, compute_dtype=jnp.float32))
    assert out_f32.shape == (B, L, C_OUT), out_f32.shape
    assert jnp.allclose(out_f32, ref, atol=1e-4, rtol=1e-4), "f32 mismatch vs reference"

    # Default path (bf16 MXU compute, f32 accumulation) — looser tolerance.
    out_bf16 = jax.block_until_ready(cnn_decoder(x, w1, b1, w2, b2))
    assert out_bf16.shape == (B, L, C_OUT), out_bf16.shape
    assert jnp.allclose(out_bf16, ref, atol=1e-1, rtol=5e-2), "bf16 mismatch vs reference"

    print("KERNEL_OK")
</pallas_src>

<mosaic_0001>
module attributes {stable_mosaic.version = 11 : i64} {
  func.func @_kernel(%arg0: i32, %arg1: memref<8x16xf32, #tpu.memory_space<vmem>>, %arg2: memref<16x384xf32, #tpu.memory_space<vmem>>, %arg3: memref<1x128xf32, #tpu.memory_space<vmem>>, %arg4: memref<128x384xf32, #tpu.memory_space<vmem>>, %arg5: memref<1x128xf32, #tpu.memory_space<vmem>>, %arg6: memref<8x128xf32, #tpu.memory_space<vmem>>, %arg7: memref<8x128xf32, #tpu.memory_space<vmem>>) attributes {dimension_semantics = [#tpu.dimension_semantics<parallel>], iteration_bounds = array<i64: 2>, scalar_prefetch = 0 : i64, scratch_operands = 1 : i64, tpu.core_type = #tpu.core_type<tc>, window_params = [{transform_indices = @transform_0, window_bounds = array<i64: 8, 16>}, {pipeline_mode = #tpu.pipeline_mode<synchronous>, transform_indices = @transform_1, window_bounds = array<i64: 16, 384>}, {pipeline_mode = #tpu.pipeline_mode<synchronous>, transform_indices = @transform_2, window_bounds = array<i64: 1, 128>}, {pipeline_mode = #tpu.pipeline_mode<synchronous>, transform_indices = @transform_3, window_bounds = array<i64: 128, 384>}, {pipeline_mode = #tpu.pipeline_mode<synchronous>, transform_indices = @transform_4, window_bounds = array<i64: 1, 128>}, {transform_indices = @transform_5, window_bounds = array<i64: 8, 128>}]} {
    %0 = tpu.iota {dimensions = array<i32: 0>} : vector<8x1xi32>
    %c8_i32 = arith.constant 8 : i32
    %c0_i32 = arith.constant 0 : i32
    %1 = arith.cmpi eq, %c8_i32, %c0_i32 : i32
    %c1_i32 = arith.constant 1 : i32
    %2 = arith.select %1, %c1_i32, %c8_i32 : i32
    %3 = vector.broadcast %2 : i32 to vector<8x1xi32>
    %4 = arith.remsi %0, %3 : vector<8x1xi32>
    %c0_i32_0 = arith.constant 0 : i32
    %5 = vector.broadcast %c0_i32_0 : i32 to vector<8x1xi32>
    %6 = arith.cmpi ne, %4, %5 : vector<8x1xi32>
    %c0_i32_1 = arith.constant 0 : i32
    %7 = vector.broadcast %c0_i32_1 : i32 to vector<8x1xi32>
    %8 = arith.cmpi slt, %4, %7 : vector<8x1xi32>
    %c0_i32_2 = arith.constant 0 : i32
    %9 = arith.cmpi slt, %2, %c0_i32_2 : i32
    %10 = vector.broadcast %9 : i1 to vector<8x1xi1>
    %11 = vector.broadcast %10 : vector<8x1xi1> to vector<8x1xi1>
    %12 = arith.xori %8, %11 : vector<8x1xi1>
    %13 = arith.andi %12, %6 : vector<8x1xi1>
    %14 = vector.broadcast %2 : i32 to vector<8x1xi32>
    %15 = arith.addi %4, %14 : vector<8x1xi32>
    %16 = arith.select %13, %15, %4 : vector<8x1xi1>, vector<8x1xi32>
    %c0_i32_3 = arith.constant 0 : i32
    %17 = vector.broadcast %c0_i32_3 : i32 to vector<8x1xi32>
    %18 = arith.cmpi ne, %16, %17 : vector<8x1xi32>
    %c7_i32 = arith.constant 7 : i32
    %19 = vector.broadcast %c7_i32 : i32 to vector<8x1xi32>
    %20 = arith.cmpi ne, %16, %19 : vector<8x1xi32>
    %c0 = arith.constant 0 : index
    %c0_4 = arith.constant 0 : index
    %21 = vector.load %arg1[%c0, %c0_4] : memref<8x16xf32, #tpu.memory_space<vmem>>, vector<8x16xf32>
    %c0_5 = arith.constant 0 : index
    %c0_6 = arith.constant 0 : index
    %22 = vector.load %arg2[%c0_5, %c0_6] : memref<16x384xf32, #tpu.memory_space<vmem>>, vector<16x384xf32>
    %cst = arith.constant dense<0.000000e+00> : vector<8x384xf32>
    %23 = tpu.matmul %21, %22, %cst {dimension_numbers = #tpu.dot_dimension_numbers<[1], [0], [0], [1], [0, 0, 1, 1], [], []>} : vector<8x16xf32>, vector<16x384xf32>, vector<8x384xf32> -> vector<8x384xf32>
    %24 = vector.extract_strided_slice %23 {offsets = [0, 0], sizes = [8, 128], strides = [1, 1]} : vector<8x384xf32> to vector<8x128xf32>
    %25 = vector.extract_strided_slice %23 {offsets = [0, 128], sizes = [8, 128], strides = [1, 1]} : vector<8x384xf32> to vector<8x128xf32>
    %26 = vector.extract_strided_slice %23 {offsets = [0, 256], sizes = [8, 128], strides = [1, 1]} : vector<8x384xf32> to vector<8x128xf32>
    %c1_i32_7 = arith.constant 1 : i32
    %27 = tpu.dynamic_rotate %24 by %c1_i32_7 dim 0 : vector<8x128xf32>, i32 -> vector<8x128xf32>
    %cst_8 = arith.constant 0.000000e+00 : f32
    %28 = vector.shape_cast %18 : vector<8x1xi1> to vector<8x1xi1>
    %29 = vector.broadcast %28 : vector<8x1xi1> to vector<8x128xi1>
    %30 = vector.broadcast %cst_8 : f32 to vector<8x128xf32>
    %31 = arith.select %29, %27, %30 : vector<8x128xi1>, vector<8x128xf32>
    %c7_i32_9 = arith.constant 7 : i32
    %32 = tpu.dynamic_rotate %26 by %c7_i32_9 dim 0 : vector<8x128xf32>, i32 -> vector<8x128xf32>
    %cst_10 = arith.constant 0.000000e+00 : f32
    %33 = vector.shape_cast %20 : vector<8x1xi1> to vector<8x1xi1>
    %34 = vector.broadcast %33 : vector<8x1xi1> to vector<8x128xi1>
    %35 = vector.broadcast %cst_10 : f32 to vector<8x128xf32>
    %36 = arith.select %34, %32, %35 : vector<8x128xi1>, vector<8x128xf32>
    %37 = arith.addf %25, %31 : vector<8x128xf32>
    %38 = arith.addf %37, %36 : vector<8x128xf32>
    %c0_11 = arith.constant 0 : index
    %c0_12 = arith.constant 0 : index
    %39 = vector.load %arg3[%c0_11, %c0_12] : memref<1x128xf32, #tpu.memory_space<vmem>>, vector<1x128xf32>
    %40 = vector.broadcast %39 : vector<1x128xf32> to vector<8x128xf32>
    %41 = arith.addf %38, %40 : vector<8x128xf32>
    %cst_13 = arith.constant 0.000000e+00 : f32
    %42 = vector.broadcast %cst_13 : f32 to vector<8x128xf32>
    %43 = arith.maximumf %41, %42 : vector<8x128xf32>
    %c0_14 = arith.constant 0 : index
    %c0_15 = arith.constant 0 : index
    %44 = vector.load %arg7[%c0_14, %c0_15] : memref<8x128xf32, #tpu.memory_space<vmem>>, vector<8x128xf32>
    tpu.vector_store %arg7[%c0_14, %c0_15], %43 {strides = array<i32>} : memref<8x128xf32, #tpu.memory_space<vmem>>, vector<8x128xf32>,
    %c0_16 = arith.constant 0 : index
    %c0_17 = arith.constant 0 : index
    %45 = vector.load %arg7[%c0_16, %c0_17] : memref<8x128xf32, #tpu.memory_space<vmem>>, vector<8x128xf32>
    %c0_18 = arith.constant 0 : index
    %c0_19 = arith.constant 0 : index
    %46 = vector.load %arg4[%c0_18, %c0_19] : memref<128x384xf32, #tpu.memory_space<vmem>>, vector<128x384xf32>
    %cst_20 = arith.constant dense<0.000000e+00> : vector<8x384xf32>
    %47 = tpu.matmul %45, %46, %cst_20 {dimension_numbers = #tpu.dot_dimension_numbers<[1], [0], [0], [1], [0, 0, 1, 1], [], []>} : vector<8x128xf32>, vector<128x384xf32>, vector<8x384xf32> -> vector<8x384xf32>
    %48 = vector.extract_strided_slice %47 {offsets = [0, 0], sizes = [8, 128], strides = [1, 1]} : vector<8x384xf32> to vector<8x128xf32>
    %49 = vector.extract_strided_slice %47 {offsets = [0, 128], sizes = [8, 128], strides = [1, 1]} : vector<8x384xf32> to vector<8x128xf32>
    %50 = vector.extract_strided_slice %47 {offsets = [0, 256], sizes = [8, 128], strides = [1, 1]} : vector<8x384xf32> to vector<8x128xf32>
    %c1_i32_21 = arith.constant 1 : i32
    %51 = tpu.dynamic_rotate %48 by %c1_i32_21 dim 0 : vector<8x128xf32>, i32 -> vector<8x128xf32>
    %cst_22 = arith.constant 0.000000e+00 : f32
    %52 = vector.shape_cast %18 : vector<8x1xi1> to vector<8x1xi1>
    %53 = vector.broadcast %52 : vector<8x1xi1> to vector<8x128xi1>
    %54 = vector.broadcast %cst_22 : f32 to vector<8x128xf32>
    %55 = arith.select %53, %51, %54 : vector<8x128xi1>, vector<8x128xf32>
    %c7_i32_23 = arith.constant 7 : i32
    %56 = tpu.dynamic_rotate %50 by %c7_i32_23 dim 0 : vector<8x128xf32>, i32 -> vector<8x128xf32>
    %cst_24 = arith.constant 0.000000e+00 : f32
    %57 = vector.shape_cast %20 : vector<8x1xi1> to vector<8x1xi1>
    %58 = vector.broadcast %57 : vector<8x1xi1> to vector<8x128xi1>
    %59 = vector.broadcast %cst_24 : f32 to vector<8x128xf32>
    %60 = arith.select %58, %56, %59 : vector<8x128xi1>, vector<8x128xf32>
    %61 = arith.addf %49, %55 : vector<8x128xf32>
    %62 = arith.addf %61, %60 : vector<8x128xf32>
    %c0_25 = arith.constant 0 : index
    %c0_26 = arith.constant 0 : index
    %63 = vector.load %arg5[%c0_25, %c0_26] : memref<1x128xf32, #tpu.memory_space<vmem>>, vector<1x128xf32>
    %64 = vector.broadcast %63 : vector<1x128xf32> to vector<8x128xf32>
    %65 = arith.addf %62, %64 : vector<8x128xf32>
    %cst_27 = arith.constant 0.000000e+00 : f32
    %66 = vector.broadcast %cst_27 : f32 to vector<8x128xf32>
    %67 = arith.maximumf %65, %66 : vector<8x128xf32>
    %c0_28 = arith.constant 0 : index
    %c0_29 = arith.constant 0 : index
    %68 = vector.load %arg6[%c0_28, %c0_29] : memref<8x128xf32, #tpu.memory_space<vmem>>, vector<8x128xf32>
    tpu.vector_store %arg6[%c0_28, %c0_29], %67 {strides = array<i32>} : memref<8x128xf32, #tpu.memory_space<vmem>>, vector<8x128xf32>,
    return
  }
  func.func @transform_0(%arg0: i32) -> (i32, i32) {
    %c0_i32 = arith.constant 0 : i32
    %c0_i32_0 = arith.constant 0 : i32
    return %arg0, %c0_i32 : i32, i32
  }
  func.func @transform_1(%arg0: i32) -> (i32, i32) {
    %c0_i32 = arith.constant 0 : i32
    %c0_i32_0 = arith.constant 0 : i32
    %c0_i32_1 = arith.constant 0 : i32
    return %c0_i32, %c0_i32_0 : i32, i32
  }
  func.func @transform_2(%arg0: i32) -> (i32, i32) {
    %c0_i32 = arith.constant 0 : i32
    %c0_i32_0 = arith.constant 0 : i32
    %c0_i32_1 = arith.constant 0 : i32
    return %c0_i32, %c0_i32_0 : i32, i32
  }
  func.func @transform_3(%arg0: i32) -> (i32, i32) {
    %c0_i32 = arith.constant 0 : i32
    %c0_i32_0 = arith.constant 0 : i32
    %c0_i32_1 = arith.constant 0 : i32
    return %c0_i32, %c0_i32_0 : i32, i32
  }
  func.func @transform_4(%arg0: i32) -> (i32, i32) {
    %c0_i32 = arith.constant 0 : i32
    %c0_i32_0 = arith.constant 0 : i32
    %c0_i32_1 = arith.constant 0 : i32
    return %c0_i32, %c0_i32_0 : i32, i32
  }
  func.func @transform_5(%arg0: i32) -> (i32, i32) {
    %c0_i32 = arith.constant 0 : i32
    %c0_i32_0 = arith.constant 0 : i32
    return %arg0, %c0_i32 : i32, i32
  }
}

</mosaic_0001>

<llo_original>
// kernel: tpu_custom_call.1
$region0: #{tpu_custom_call.1}
  #allocation0 [shape = 'u32[]', space=smem, size = 0x4, offset = 0x4, fixed_abs, tag = 'smem constant byte address 0x4 - core index']
  #allocation1 [shape = 'u32[144,128]{1,0:T(1,128)}', space=vmem, size = 0x12000, scoped, tag = 'internal scratch']
  #allocation2 [shape = 'f32[8,128]{1,0:T(8,128)}', space=vmem, size = 0x1000, scoped, tag = 'scratch operand']
  %s0 = inlined_call_operand.hbm [shape: f32[16,16], index: 0, kind: input, shape index: {}]
  %s1 = inlined_call_operand.hbm [shape: f32[16,384], index: 1, kind: input, shape index: {}]
  %s2 = inlined_call_operand.vmem [shape: f32[1,128], index: 2, kind: input, shape index: {}]
  %s3 = inlined_call_operand.hbm [shape: f32[128,384], index: 3, kind: input, shape index: {}]
  %s4 = inlined_call_operand.vmem [shape: f32[1,128], index: 4, kind: input, shape index: {}]
  %s5 = inlined_call_operand.hbm [shape: f32[16,128], index: 5, kind: output, shape index: {}]
  %s6 = sld [smem:[#allocation0]]
  $region65: #{tpu_custom_call.1} parent=0
    _
  %s8 = ssub.s32 1, %s6
  %s9 = scalar_select 0, %s8, %s6
  $region1: #{tpu_custom_call.1} parent=0
    #allocation3 [shape = 'u8[8192]{0}', space=vmem, size = 0x2000, scoped, tag = 'input window, operand 0']
    #allocation4 [shape = 's32[2]{0}', space=sflag, size = 0x8, scoped, tag = 'scoped memory for tpu_custom_call.1']
    #allocation5 [shape = 's32[2]{0}', space=sflag, size = 0x8, scoped, tag = 'scoped memory for tpu_custom_call.1']
    #allocation6 [shape = 'u8[24576]{0}', space=vmem, size = 0x6000, scoped, tag = 'input window, operand 1, single buffered']
    #allocation7 [shape = 's32[1]{0}', space=sflag, size = 0x4, scoped, tag = 'scoped memory for tpu_custom_call.1']
    #allocation8 [shape = 'u8[196608]{0}', space=vmem, size = 0x30000, scoped, tag = 'input window, operand 3, single buffered']
    #allocation9 [shape = 'u8[8192]{0}', space=vmem, size = 0x2000, scoped, tag = 'output window, operand 0']
    %10 = vsyncpa [#allocation4], 0
    %s11 = scalar_lea.sflag [#allocation4], 1
    %12 = vsyncpa %s11, 0
    %13 = vsyncpa [#allocation7], 0
    %14 = vsyncpa [#allocation5], 0
    %s15 = scalar_lea.sflag [#allocation5], 1
    %16 = vsyncpa %s15, 0
    loop: start=0, step=1, limit=4
    $region2: #{tpu_custom_call.1} parent=1 // loop_pre_header
      _
    $region3: #{tpu_custom_call.1} parent=1 // loop_header
      %s18 = sphi 0, %s22
      %p19 = scmp.ge.s32.totalorder %s18, 4
      %s28 = sphi 0, %s30
      %s31 = sphi 0, %s28
      %s32 = sphi 0, %s31
      %s48 = sphi 0, %s32
      %s52 = sphi 0, %s52
      %s54 = sphi 0, %s52
      %s55 = sphi 0, %s54
      %s69 = sphi 0, %s55
      %s73 = sphi 0, %s73
      %s75 = sphi 0, %s73
      %s76 = sphi 0, %s75
      %s90 = sphi 0, %s76
      %s94 = sphi 0, %s94
      %s96 = sphi 0, %s94
      %s97 = sphi 0, %s96
      %s111 = sphi 0, %s97
      %s115 = sphi 0, %s115
      %s117 = sphi 0, %s115
      %s118 = sphi 0, %s117
      %s132 = sphi 0, %s118
      %s138 = sphi 0, %s140
      %s141 = sphi 0, %s138
      %s142 = sphi 0, %s141
      %s158 = sphi 0, %s142
    $region4: #{tpu_custom_call.1} parent=1 // loop_header_branch
      %21 = sbr.rel (%p19) target = $region8
    $region5: #{tpu_custom_call.1} parent=1 // loop_body
      %s23 = ssub.s32 %s18, 1
      %s24 = ssub.s32 %s18, 2
      %s25 = sadd.s32 %s18, 1
      %s26 = ssub.s32 %s18, %s25
      %p27 = scmp.eq.s32.totalorder %s26, 0
      %s29 = sadd.s32 %s28, 1
      %s30 = scalar_select %p27, %s28, %s29
      %p33 = pneg %p27
      %p34 = scmp.eq.s32.totalorder %s18, 1
      %p35 = por %p33, %p34
      %p36 = scmp.ne.s32.totalorder %s28, %s31
      %p37 = scmp.eq.s32.totalorder %s18, 0
      %p38 = por %p36, %p37
      %p39 = scmp.ne.s32.totalorder %s28, %s31
      %p40 = scmp.eq.s32.totalorder %s23, 1
      %p41 = por %p39, %p40
      %p42 = scmp.ne.s32.totalorder %s31, %s32
      %p43 = scmp.eq.s32.totalorder %s23, 0
      %p44 = por %p42, %p43
      %p45 = scmp.ne.s32.totalorder %s31, %s32
      %p46 = scmp.eq.s32.totalorder %s24, 1
      %p47 = por %p45, %p46
      %p49 = scmp.ne.s32.totalorder %s32, %s48
      %p50 = scmp.eq.s32.totalorder %s24, 0
      %p51 = por %p49, %p50
      %s53 = sadd.s32 %s52, 1
      %p56 = scmp.eq.s32.totalorder %s18, 1
      %p57 = scmp.ne.s32.totalorder %s52, %s54
      %p58 = scmp.eq.s32.totalorder %s18, 0
      %p59 = por %p57, %p58
      %p60 = scmp.ne.s32.totalorder %s52, %s54
      %p61 = scmp.eq.s32.totalorder %s23, 1
      %p62 = por %p60, %p61
      %p63 = scmp.ne.s32.totalorder %s54, %s55
      %p64 = scmp.eq.s32.totalorder %s23, 0
      %p65 = por %p63, %p64
      %p66 = scmp.ne.s32.totalorder %s54, %s55
      %p67 = scmp.eq.s32.totalorder %s24, 1
      %p68 = por %p66, %p67
      %p70 = scmp.ne.s32.totalorder %s55, %s69
      %p71 = scmp.eq.s32.totalorder %s24, 0
      %p72 = por %p70, %p71
      %s74 = sadd.s32 %s73, 1
      %p77 = scmp.eq.s32.totalorder %s18, 1
      %p78 = scmp.ne.s32.totalorder %s73, %s75
      %p79 = scmp.eq.s32.totalorder %s18, 0
      %p80 = por %p78, %p79
      %p81 = scmp.ne.s32.totalorder %s73, %s75
      %p82 = scmp.eq.s32.totalorder %s23, 1
      %p83 = por %p81, %p82
      %p84 = scmp.ne.s32.totalorder %s75, %s76
      %p85 = scmp.eq.s32.totalorder %s23, 0
      %p86 = por %p84, %p85
      %p87 = scmp.ne.s32.totalorder %s75, %s76
      %p88 = scmp.eq.s32.totalorder %s24, 1
      %p89 = por %p87, %p88
      %p91 = scmp.ne.s32.totalorder %s76, %s90
      %p92 = scmp.eq.s32.totalorder %s24, 0
      %p93 = por %p91, %p92
      %s95 = sadd.s32 %s94, 1
      %p98 = scmp.eq.s32.totalorder %s18, 1
      %p99 = scmp.ne.s32.totalorder %s94, %s96
      %p100 = scmp.eq.s32.totalorder %s18, 0
      %p101 = por %p99, %p100
      %p102 = scmp.ne.s32.totalorder %s94, %s96
      %p103 = scmp.eq.s32.totalorder %s23, 1
      %p104 = por %p102, %p103
      %p105 = scmp.ne.s32.totalorder %s96, %s97
      %p106 = scmp.eq.s32.totalorder %s23, 0
      %p107 = por %p105, %p106
      %p108 = scmp.ne.s32.totalorder %s96, %s97
      %p109 = scmp.eq.s32.totalorder %s24, 1
      %p110 = por %p108, %p109
      %p112 = scmp.ne.s32.totalorder %s97, %s111
      %p113 = scmp.eq.s32.totalorder %s24, 0
      %p114 = por %p112, %p113
      %s116 = sadd.s32 %s115, 1
      %p119 = scmp.eq.s32.totalorder %s18, 1
      %p120 = scmp.ne.s32.totalorder %s115, %s117
      %p121 = scmp.eq.s32.totalorder %s18, 0
      %p122 = por %p120, %p121
      %p123 = scmp.ne.s32.totalorder %s115, %s117
      %p124 = scmp.eq.s32.totalorder %s23, 1
      %p125 = por %p123, %p124
      %p126 = scmp.ne.s32.totalorder %s117, %s118
      %p127 = scmp.eq.s32.totalorder %s23, 0
      %p128 = por %p126, %p127
      %p129 = scmp.ne.s32.totalorder %s117, %s118
      %p130 = scmp.eq.s32.totalorder %s24, 1
      %p131 = por %p129, %p130
      %p133 = scmp.ne.s32.totalorder %s118, %s132
      %p134 = scmp.eq.s32.totalorder %s24, 0
      %p135 = por %p133, %p134
      %s136 = ssub.s32 %s18, %s25
      %p137 = scmp.eq.s32.totalorder %s136, 0
      %s139 = sadd.s32 %s138, 1
      %s140 = scalar_select %p137, %s138, %s139
      %p143 = pneg %p137
      %p144 = scmp.eq.s32.totalorder %s18, 1
      %p145 = por %p143, %p144
      %p146 = scmp.ne.s32.totalorder %s138, %s141
      %p147 = scmp.eq.s32.totalorder %s18, 0
      %p148 = por %p146, %p147
      %p149 = scmp.ne.s32.totalorder %s138, %s141
      %p150 = scmp.eq.s32.totalorder %s23, 1
      %p151 = por %p149, %p150
      %p152 = scmp.ne.s32.totalorder %s141, %s142
      %p153 = scmp.eq.s32.totalorder %s23, 0
      %p154 = por %p152, %p153
      %p155 = scmp.ne.s32.totalorder %s141, %s142
      %p156 = scmp.eq.s32.totalorder %s24, 1
      %p157 = por %p155, %p156
      %p159 = scmp.ne.s32.totalorder %s142, %s158
      %p160 = scmp.eq.s32.totalorder %s24, 0
      %p161 = por %p159, %p160
      %p162 = scmp.le.s32.totalorder 1, %s18
      %p163 = scmp.lt.s32.totalorder %s18, 3
      %p164 = pnand %p162, %p163
      %p165 = pneg %p164
      // Predicated region
      $region9: #{tpu_custom_call.1} parent=5 // pred_check
        _
      $region10: #{tpu_custom_call.1} parent=5 // pred_check_branch
        %167 = sbr.rel (%p164) target = $region12
      $region11: #{tpu_custom_call.1} parent=5 // pred_region
        %s168 = ssub.s32 %s18, 1
        // Predicated region
        $region13: #{tpu_custom_call.1} parent=11 // pred_check
          %p169 = pneg %p65
        $region14: #{tpu_custom_call.1} parent=11 // pred_check_branch
          %171 = sbr.rel (%p169) target = $region16
        $region15: #{tpu_custom_call.1} parent=11 // pred_region
          %s173 = ssub.s32 768, 768
          %174 = vsyncadd [#allocation7], %s173
          %s175 = sshll.u32 [#allocation6], 4
          %s176 = int_to_ptr.vmem [resolvable:$true] %s175
          %181 = dma.hbm_to_vmem [thread:$0]  %s1, 768, %s176, [#allocation7], 384, 384, 24
        $region16: #{tpu_custom_call.1} parent=11 // pred_fallthru
          _
        // Predicated region
        $region17: #{tpu_custom_call.1} parent=11 // pred_check
          %p182 = pneg %p86
        $region18: #{tpu_custom_call.1} parent=11 // pred_check_branch
          %184 = sbr.rel (%p182) target = $region20
        $region19: #{tpu_custom_call.1} parent=11 // pred_region
          _
        $region20: #{tpu_custom_call.1} parent=11 // pred_fallthru
          _
        // Predicated region
        $region21: #{tpu_custom_call.1} parent=11 // pred_check
          %p185 = pneg %p107
        $region22: #{tpu_custom_call.1} parent=11 // pred_check_branch
          %187 = sbr.rel (%p185) target = $region24
        $region23: #{tpu_custom_call.1} parent=11 // pred_region
          %s189 = ssub.s32 6144, 6144
          %190 = vsyncadd [#allocation7], %s189
          %s191 = sshll.u32 [#allocation8], 4
          %s192 = int_to_ptr.vmem [resolvable:$true] %s191
          %197 = dma.hbm_to_vmem [thread:$0]  %s3, 6144, %s192, [#allocation7], 384, 384, 24
        $region24: #{tpu_custom_call.1} parent=11 // pred_fallthru
          _
        // Predicated region
        $region25: #{tpu_custom_call.1} parent=11 // pred_check
          %p198 = pneg %p128
        $region26: #{tpu_custom_call.1} parent=11 // pred_check_branch
          %200 = sbr.rel (%p198) target = $region28
        $region27: #{tpu_custom_call.1} parent=11 // pred_region
          _
        $region28: #{tpu_custom_call.1} parent=11 // pred_fallthru
          _
      $region12: #{tpu_custom_call.1} parent=5 // pred_fallthru
        _
      %p201 = scmp.lt.s32.totalorder %s18, 2
      // Predicated region
      $region29: #{tpu_custom_call.1} parent=5 // pred_check
        %p202 = pneg %p201
      $region30: #{tpu_custom_call.1} parent=5 // pred_check_branch
        %204 = sbr.rel (%p202) target = $region32
      $region31: #{tpu_custom_call.1} parent=5 // pred_region
        // Predicated region
        $region33: #{tpu_custom_call.1} parent=31 // pred_check
          %p205 = pneg %p38
        $region34: #{tpu_custom_call.1} parent=31 // pred_check_branch
          %207 = sbr.rel (%p205) target = $region36
        $region35: #{tpu_custom_call.1} parent=31 // pred_region
          %s208 = sand.u32 %s28, 1
          %s209 = scalar_lea.sflag [#allocation4], %s208
          %s210 = sand.u32 %s28, 1
          %s211 = smul.addr %s210, 8
          %s212 = scalar_lea.vmem [#allocation3], %s211
          %s214 = ssub.s32 128, 128
          %215 = vsyncadd %s209, %s214
          %s216 = smul.addr %s18, 128
          %s217 = scalar_lea.hbm %s0, %s216
          %s219 = sshll.u32 %s212, 4
          %s220 = int_to_ptr.vmem [resolvable:$true] %s219
          %222 = dma.hbm_to_vmem [thread:$0]  %s217, 128, %s220, %s209
        $region36: #{tpu_custom_call.1} parent=31 // pred_fallthru
          _
      $region32: #{tpu_custom_call.1} parent=5 // pred_fallthru
        _
      %p223 = scmp.le.s32.totalorder 1, %s18
      %p224 = scmp.lt.s32.totalorder %s18, 3
      %p225 = pnand %p223, %p224
      %p226 = pneg %p225
      // Predicated region
      $region37: #{tpu_custom_call.1} parent=5 // pred_check
        _
      $region38: #{tpu_custom_call.1} parent=5 // pred_check_branch
        %228 = sbr.rel (%p225) target = $region40
      $region39: #{tpu_custom_call.1} parent=5 // pred_region
        %s229 = ssub.s32 %s18, 1
        %s230 = sand.u32 %s31, 1
        %s231 = scalar_lea.sflag [#allocation4], %s230
        %s232 = sand.u32 %s31, 1
        %s233 = smul.addr %s232, 8
        %s234 = scalar_lea.vmem [#allocation3], %s233
        // Predicated region
        $region41: #{tpu_custom_call.1} parent=39 // pred_check
          %p235 = pneg %p44
        $region42: #{tpu_custom_call.1} parent=39 // pred_check_branch
          %237 = sbr.rel (%p235) target = $region44
        $region43: #{tpu_custom_call.1} parent=39 // pred_region
          %238 = dma.done %s231, 128
        $region44: #{tpu_custom_call.1} parent=39 // pred_fallthru
          _
        // Predicated region
        $region45: #{tpu_custom_call.1} parent=39 // pred_check
          %p239 = pneg %p65
        $region46: #{tpu_custom_call.1} parent=39 // pred_check_branch
          %241 = sbr.rel (%p239) target = $region48
        $region47: #{tpu_custom_call.1} parent=39 // pred_region
          %242 = dma.done [#allocation7], 768
        $region48: #{tpu_custom_call.1} parent=39 // pred_fallthru
          _
        // Predicated region
        $region49: #{tpu_custom_call.1} parent=39 // pred_check
          %p243 = pneg %p107
        $region50: #{tpu_custom_call.1} parent=39 // pred_check_branch
          %245 = sbr.rel (%p243) target = $region52
        $region51: #{tpu_custom_call.1} parent=39 // pred_region
          %246 = dma.done [#allocation7], 6144
        $region52: #{tpu_custom_call.1} parent=39 // pred_fallthru
          _
        %s247 = sand.u32 %s31, 1
        %s248 = scalar_lea.sflag [#allocation4], %s247
        %s249 = sand.u32 %s31, 1
        %s250 = smul.addr %s249, 8
        %s251 = scalar_lea.vmem [#allocation3], %s250
        %p252 = pneg %p44
        %p253 = pneg %p41
        %p254 = pneg %p65
        %p255 = pneg %p62
        %p256 = pneg %p86
        %p257 = pneg %p83
        %p258 = pneg %p107
        %p259 = pneg %p104
        %p260 = pneg %p128
        %p261 = pneg %p125
        %p262 = pneg %p154
        %p263 = pneg %p151
        %s264 = sand.u32 %s141, 1
        %s265 = scalar_lea.sflag [#allocation5], %s264
        %s266 = sand.u32 %s141, 1
        %s267 = smul.addr %s266, 8
        %s268 = scalar_lea.vmem [#allocation9], %s267
        %v269 = vlaneseq
        %v270 = vshrl.u32 %v269, 7
        %vm271 = vcmp.lt.s32.totalorder %v270, 0
        %v272 = vsub.s32 0, %v270
        %v273 = vsel %vm271, %v272, %v270
        %v274 = vshrl.u32 %v273, 3
        %v275 = vand.u32 %v273, 7
        %v276 = vsub.s32 0, %v275
        %v277 = vsel %vm271, %v276, %v275
        %vm278 = vcmp.ne.s32.totalorder %v277, 0
        %vm279 = vcmp.lt.s32.totalorder %v277, 0
        %vm280 = vmand %vm279, %vm278
        %v281 = vadd.s32 %v277, 8
        %v282 = vsel %vm280, %v281, %v277
        %vm283 = vcmp.ne.s32.totalorder %v282, 0
        %vm284 = vcmp.ne.s32.totalorder %v282, 7
        %v285 = vld [vmem:[%s234] sm:$0xff]
        %v286 = vld [vmem:[#allocation6] sm:$0xff]
        %v287 = vld [vmem:[#allocation6 + $0x8] sm:$0xff]
        %v288 = vld [vmem:[#allocation6 + $0x10] sm:$0xff]
        %v289 = vld [vmem:[#allocation6 + $0x18] sm:$0xff]
        %v290 = vld [vmem:[#allocation6 + $0x20] sm:$0xff]
        %v291 = vld [vmem:[#allocation6 + $0x28] sm:$0xff]
        %vm292 = vcmask 130048
        %v294 = vsel %vm292, %v285, 0
        %296 = vmatprep.subr.mxu0 %v287
        %297 = vmatpush1.msra.mxu0 %v286
        %298 = vmatprep.subr.mxu0 %v290
        %299 = vmatpush1.msra.mxu0 %v289
        %300 = vmatprep.subr.mxu0 0.0
        %301 = vmatpush1.msra.mxu0 0.0
        %302 = vmatprep.subr.mxu0 0.0
        %303 = vmatpush1.msra.mxu0 0.0
        %304 = vmatprep.subr.mxu0 0.0
        %305 = vmatpush1.msra.mxu0 0.0
        %306 = vmatprep.subr.mxu0 0.0
        %307 = vmatpush1.msra.mxu0 0.0
        %308 = vmatprep.subr.mxu0 0.0
        %309 = vmatpush1.msra.mxu0 0.0
        %310 = vmatprep.subr.mxu0 0.0
        %311 = vmatpush1.msra.mxu0 0.0
        %312 = vmatprep.subr.mxu0 0.0
        %313 = vmatpush1.msra.mxu0 0.0
        %314 = vmatprep.subr.mxu0 0.0
        %315 = vmatpush1.msra.mxu0 0.0
        %316 = vmatprep.subr.mxu0 0.0
        %317 = vmatpush1.msra.mxu0 0.0
        %318 = vmatprep.subr.mxu0 0.0
        %319 = vmatpush1.msra.mxu0 0.0
        %320 = vmatprep.subr.mxu0 0.0
        %321 = vmatpush1.msra.mxu0 0.0
        %322 = vmatprep.subr.mxu0 0.0
        %323 = vmatpush1.msra.mxu0 0.0
        %324 = vmatprep.subr.mxu0 0.0
        %325 = vmatpush1.msra.mxu0 0.0
        %326 = vmatprep.subr.mxu0 0.0
        %327 = vmatpush1.msra.mxu0 0.0
        %328 = vmatprep.subr.mxu0 0.0
        %329 = vmatpush1.msra.mxu0 0.0
        %330 = vmatprep.subr.mxu0 0.0
        %331 = vmatpush1.msra.mxu0 0.0
        %332 = vmatprep.subr.mxu0 0.0
        %333 = vmatpush1.msra.mxu0 0.0
        %334 = vmatprep.subr.mxu0 0.0
        %335 = vmatpush1.msra.mxu0 0.0
        %336 = vmatprep.subr.mxu0 0.0
        %337 = vmatpush1.msra.mxu0 0.0
        %338 = vmatprep.subr.mxu0 0.0
        %339 = vmatpush1.msra.mxu0 0.0
        %340 = vmatprep.subr.mxu0 0.0
        %341 = vmatpush1.msra.mxu0 0.0
        %342 = vmatprep.subr.mxu0 0.0
        %343 = vmatpush1.msra.mxu0 0.0
        %344 = vmatprep.subr.mxu0 0.0
        %345 = vmatpush1.msra.mxu0 0.0
        %346 = vmatprep.subr.mxu0 0.0
        %347 = vmatpush1.msra.mxu0 0.0
        %348 = vmatprep.subr.mxu0 0.0
        %349 = vmatpush1.msra.mxu0 0.0
        %350 = vmatprep.subr.mxu0 0.0
        %351 = vmatpush1.msra.mxu0 0.0
        %352 = vmatprep.subr.mxu0 0.0
        %353 = vmatpush1.msra.mxu0 0.0
        %354 = vmatprep.subr.mxu0 0.0
        %355 = vmatpush1.msra.mxu0 0.0
        %356 = vmatprep.subr.mxu0 0.0
        %357 = vmatpush1.msra.mxu0 0.0
        %358 = vmatprep.subr.mxu0 0.0
        %359 = vmatpush1.msra.mxu0 0.0
        %360 = vmatprep.mubr.f32.mxu0 0.0
        %361 = vmatmul.mubr.f32.gmra.mrb[0].mxu0 %v294
        %v362 = vpop.f32.mrb[0].mxu0
        %v363 = vadd.f32 0.0, %v362
        %v364 = vpop.f32.mrb[0].mxu0
        %v365 = vadd.f32 0.0, %v364
        %366 = vdwg.mxu0
        %367 = vmatprep.subr.mxu0 0.0
        %368 = vmatpush1.msra.mxu0 %v288
        %369 = vmatprep.subr.mxu0 0.0
        %370 = vmatpush1.msra.mxu0 %v291
        %371 = vmatprep.subr.mxu0 0.0
        %372 = vmatpush1.msra.mxu0 0.0
        %373 = vmatprep.subr.mxu0 0.0
        %374 = vmatpush1.msra.mxu0 0.0
        %375 = vmatprep.subr.mxu0 0.0
        %376 = vmatpush1.msra.mxu0 0.0
        %377 = vmatprep.subr.mxu0 0.0
        %378 = vmatpush1.msra.mxu0 0.0
        %379 = vmatprep.subr.mxu0 0.0
        %380 = vmatpush1.msra.mxu0 0.0
        %381 = vmatprep.subr.mxu0 0.0
        %382 = vmatpush1.msra.mxu0 0.0
        %383 = vmatprep.subr.mxu0 0.0
        %384 = vmatpush1.msra.mxu0 0.0
        %385 = vmatprep.subr.mxu0 0.0
        %386 = vmatpush1.msra.mxu0 0.0
        %387 = vmatprep.subr.mxu0 0.0
        %388 = vmatpush1.msra.mxu0 0.0
        %389 = vmatprep.subr.mxu0 0.0
        %390 = vmatpush1.msra.mxu0 0.0
        %391 = vmatprep.subr.mxu0 0.0
        %392 = vmatpush1.msra.mxu0 0.0
        %393 = vmatprep.subr.mxu0 0.0
        %394 = vmatpush1.msra.mxu0 0.0
        %395 = vmatprep.subr.mxu0 0.0
        %396 = vmatpush1.msra.mxu0 0.0
        %397 = vmatprep.subr.mxu0 0.0
        %398 = vmatpush1.msra.mxu0 0.0
        %399 = vmatprep.subr.mxu0 0.0
        %400 = vmatpush1.msra.mxu0 0.0
        %401 = vmatprep.subr.mxu0 0.0
        %402 = vmatpush1.msra.mxu0 0.0
        %403 = vmatprep.subr.mxu0 0.0
        %404 = vmatpush1.msra.mxu0 0.0
        %405 = vmatprep.subr.mxu0 0.0
        %406 = vmatpush1.msra.mxu0 0.0
        %407 = vmatprep.subr.mxu0 0.0
        %408 = vmatpush1.msra.mxu0 0.0
        %409 = vmatprep.subr.mxu0 0.0
        %410 = vmatpush1.msra.mxu0 0.0
        %411 = vmatprep.subr.mxu0 0.0
        %412 = vmatpush1.msra.mxu0 0.0
        %413 = vmatprep.subr.mxu0 0.0
        %414 = vmatpush1.msra.mxu0 0.0
        %415 = vmatprep.subr.mxu0 0.0
        %416 = vmatpush1.msra.mxu0 0.0
        %417 = vmatprep.subr.mxu0 0.0
        %418 = vmatpush1.msra.mxu0 0.0
        %419 = vmatprep.subr.mxu0 0.0
        %420 = vmatpush1.msra.mxu0 0.0
        %421 = vmatprep.subr.mxu0 0.0
        %422 = vmatpush1.msra.mxu0 0.0
        %423 = vmatprep.subr.mxu0 0.0
        %424 = vmatpush1.msra.mxu0 0.0
        %425 = vmatprep.subr.mxu0 0.0
        %426 = vmatpush1.msra.mxu0 0.0
        %427 = vmatprep.subr.mxu0 0.0
        %428 = vmatpush1.msra.mxu0 0.0
        %429 = vmatprep.subr.mxu0 0.0
        %430 = vmatpush1.msra.mxu0 0.0
        %431 = vmatprep.mubr.f32.mxu0 0.0
        %432 = vmatmul.mubr.f32.gmra.mrb[0].mxu0 %v294
        %v433 = vpop.f32.mrb[0].mxu0
        %v434 = vadd.f32 0.0, %v433
        %v435 = vpop.f32.mrb[0].mxu0
        %436 = vdwg.mxu0
        %v437 = vrot.slane %v363, 7
        %v438 = vsel %vm283, 1, 0
        %vm439 = vcmp.eq.s32.totalorder %v438, 1
        %v440 = vsel %vm439, %v437, 0.0
        %v441 = vrot.slane %v434, 1
        %v442 = vsel %vm284, 1, 0
        %vm443 = vcmp.eq.s32.totalorder %v442, 1
        %v444 = vsel %vm443, %v441, 0.0
        %v445 = vadd.f32 %v365, %v440
        %v446 = vadd.f32 %v445, %v444
        %v447 = vld [vmem:[%s2] sm:$0x1]
        %v449 = vlaneseq
        %v450 = vshrl.u32 %v449, 7
        %v451 = vsub.s32 0, %v450
        %v452 = vrot.slane %v447, %v451
        %v454 = vadd.f32 %v446, %v452
        %v455 = vmax.f32 %v454, 0.0
        %456 = vst [vmem:[#allocation2] sm:$0xff] %v455
        %v457 = vld [vmem:[#allocation2] sm:$0xff]
        %v458 = vld [vmem:[#allocation8] sm:$0xff]
        %v459 = vld [vmem:[#allocation8 + $0x8] sm:$0xff]
        %v460 = vld [vmem:[#allocation8 + $0x10] sm:$0xff]
        %v461 = vld [vmem:[#allocation8 + $0x18] sm:$0xff]
        %v462 = vld [vmem:[#allocation8 + $0x20] sm:$0xff]
        %v463 = vld [vmem:[#allocation8 + $0x28] sm:$0xff]
        %v464 = vld [vmem:[#allocation8 + $0x30] sm:$0xff]
        %v465 = vld [vmem:[#allocation8 + $0x38] sm:$0xff]
        %v466 = vld [vmem:[#allocation8 + $0x40] sm:$0xff]
        %v467 = vld [vmem:[#allocation8 + $0x48] sm:$0xff]
        %v468 = vld [vmem:[#allocation8 + $0x50] sm:$0xff]
        %v469 = vld [vmem:[#allocation8 + $0x58] sm:$0xff]
        %v470 = vld [vmem:[#allocation8 + $0x60] sm:$0xff]
        %v471 = vld [vmem:[#allocation8 + $0x68] sm:$0xff]
        %v472 = vld [vmem:[#allocation8 + $0x70] sm:$0xff]
        %v473 = vld [vmem:[#allocation8 + $0x78] sm:$0xff]
        %v474 = vld [vmem:[#allocation8 + $0x80] sm:$0xff]
        %v475 = vld [vmem:[#allocation8 + $0x88] sm:$0xff]
        %v476 = vld [vmem:[#allocation8 + $0x90] sm:$0xff]
        %v477 = vld [vmem:[#allocation8 + $0x98] sm:$0xff]
        %v478 = vld [vmem:[#allocation8 + $0xa0] sm:$0xff]
        %v479 = vld [vmem:[#allocation8 + $0xa8] sm:$0xff]
        %v480 = vld [vmem:[#allocation8 + $0xb0] sm:$0xff]
        %v481 = vld [vmem:[#allocation8 + $0xb8] sm:$0xff]
        %v482 = vld [vmem:[#allocation8 + $0xc0] sm:$0xff]
        %v483 = vld [vmem:[#allocation8 + $0xc8] sm:$0xff]
        %v484 = vld [vmem:[#allocation8 + $0xd0] sm:$0xff]
        %v485 = vld [vmem:[#allocation8 + $0xd8] sm:$0xff]
        %v486 = vld [vmem:[#allocation8 + $0xe0] sm:$0xff]
        %v487 = vld [vmem:[#allocation8 + $0xe8] sm:$0xff]
        %v488 = vld [vmem:[#allocation8 + $0xf0] sm:$0xff]
        %v489 = vld [vmem:[#allocation8 + $0xf8] sm:$0xff]
        %v490 = vld [vmem:[#allocation8 + $0x100] sm:$0xff]
        %v491 = vld [vmem:[#allocation8 + $0x108] sm:$0xff]
        %v492 = vld [vmem:[#allocation8 + $0x110] sm:$0xff]
        %v493 = vld [vmem:[#allocation8 + $0x118] sm:$0xff]
        %v494 = vld [vmem:[#allocation8 + $0x120] sm:$0xff]
        %v495 = vld [vmem:[#allocation8 + $0x128] sm:$0xff]
        %v496 = vld [vmem:[#allocation8 + $0x130] sm:$0xff]
        %v497 = vld [vmem:[#allocation8 + $0x138] sm:$0xff]
        %v498 = vld [vmem:[#allocation8 + $0x140] sm:$0xff]
        %v499 = vld [vmem:[#allocation8 + $0x148] sm:$0xff]
        %v500 = vld [vmem:[#allocation8 + $0x150] sm:$0xff]
        %v501 = vld [vmem:[#allocation8 + $0x158] sm:$0xff]
        %v502 = vld [vmem:[#allocation8 + $0x160] sm:$0xff]
        %v503 = vld [vmem:[#allocation8 + $0x168] sm:$0xff]
        %v504 = vld [vmem:[#allocation8 + $0x170] sm:$0xff]
        %v505 = vld [vmem:[#allocation8 + $0x178] sm:$0xff]
        %506 = vmatprep.subr.mxu0 %v459
        %507 = vmatpush1.msra.mxu0 %v458
        %508 = vmatprep.subr.mxu0 %v462
        %509 = vmatpush1.msra.mxu0 %v461
        %510 = vmatprep.subr.mxu0 %v465
        %511 = vmatpush1.msra.mxu0 %v464
        %512 = vmatprep.subr.mxu0 %v468
        %513 = vmatpush1.msra.mxu0 %v467
        %514 = vmatprep.subr.mxu0 %v471
        %515 = vmatpush1.msra.mxu0 %v470
        %516 = vmatprep.subr.mxu0 %v474
        %517 = vmatpush1.msra.mxu0 %v473
        %518 = vmatprep.subr.mxu0 %v477
        %519 = vmatpush1.msra.mxu0 %v476
        %520 = vmatprep.subr.mxu0 %v480
        %521 = vmatpush1.msra.mxu0 %v479
        %522 = vmatprep.subr.mxu0 %v483
        %523 = vmatpush1.msra.mxu0 %v482
        %524 = vmatprep.subr.mxu0 %v486
        %525 = vmatpush1.msra.mxu0 %v485
        %526 = vmatprep.subr.mxu0 %v489
        %527 = vmatpush1.msra.mxu0 %v488
        %528 = vmatprep.subr.mxu0 %v492
        %529 = vmatpush1.msra.mxu0 %v491
        %530 = vmatprep.subr.mxu0 %v495
        %531 = vmatpush1.msra.mxu0 %v494
        %532 = vmatprep.subr.mxu0 %v498
        %533 = vmatpush1.msra.mxu0 %v497
        %534 = vmatprep.subr.mxu0 %v501
        %535 = vmatpush1.msra.mxu0 %v500
        %536 = vmatprep.subr.mxu0 %v504
        %537 = vmatpush1.msra.mxu0 %v503
        %538 = vmatprep.subr.mxu0 0.0
        %539 = vmatpush1.msra.mxu0 0.0
        %540 = vmatprep.subr.mxu0 0.0
        %541 = vmatpush1.msra.mxu0 0.0
        %542 = vmatprep.subr.mxu0 0.0
        %543 = vmatpush1.msra.mxu0 0.0
        %544 = vmatprep.subr.mxu0 0.0
        %545 = vmatpush1.msra.mxu0 0.0
        %546 = vmatprep.subr.mxu0 0.0
        %547 = vmatpush1.msra.mxu0 0.0
        %548 = vmatprep.subr.mxu0 0.0
        %549 = vmatpush1.msra.mxu0 0.0
        %550 = vmatprep.subr.mxu0 0.0
        %551 = vmatpush1.msra.mxu0 0.0
        %552 = vmatprep.subr.mxu0 0.0
        %553 = vmatpush1.msra.mxu0 0.0
        %554 = vmatprep.subr.mxu0 0.0
        %555 = vmatpush1.msra.mxu0 0.0
        %556 = vmatprep.subr.mxu0 0.0
        %557 = vmatpush1.msra.mxu0 0.0
        %558 = vmatprep.subr.mxu0 0.0
        %559 = vmatpush1.msra.mxu0 0.0
        %560 = vmatprep.subr.mxu0 0.0
        %561 = vmatpush1.msra.mxu0 0.0
        %562 = vmatprep.subr.mxu0 0.0
        %563 = vmatpush1.msra.mxu0 0.0
        %564 = vmatprep.subr.mxu0 0.0
        %565 = vmatpush1.msra.mxu0 0.0
        %566 = vmatprep.subr.mxu0 0.0
        %567 = vmatpush1.msra.mxu0 0.0
        %568 = vmatprep.subr.mxu0 0.0
        %569 = vmatpush1.msra.mxu0 0.0
        %570 = vmatprep.mubr.f32.mxu0 0.0
        %571 = vmatmul.mubr.f32.gmra.mrb[0].mxu0 %v457
        %v572 = vpop.f32.mrb[0].mxu0
        %v573 = vadd.f32 0.0, %v572
        %v574 = vpop.f32.mrb[0].mxu0
        %v575 = vadd.f32 0.0, %v574
        %576 = vdwg.mxu0
        %577 = vmatprep.subr.mxu0 0.0
        %578 = vmatpush1.msra.mxu0 %v460
        %579 = vmatprep.subr.mxu0 0.0
        %580 = vmatpush1.msra.mxu0 %v463
        %581 = vmatprep.subr.mxu0 0.0
        %582 = vmatpush1.msra.mxu0 %v466
        %583 = vmatprep.subr.mxu0 0.0
        %584 = vmatpush1.msra.mxu0 %v469
        %585 = vmatprep.subr.mxu0 0.0
        %586 = vmatpush1.msra.mxu0 %v472
        %587 = vmatprep.subr.mxu0 0.0
        %588 = vmatpush1.msra.mxu0 %v475
        %589 = vmatprep.subr.mxu0 0.0
        %590 = vmatpush1.msra.mxu0 %v478
        %591 = vmatprep.subr.mxu0 0.0
        %592 = vmatpush1.msra.mxu0 %v481
        %593 = vmatprep.subr.mxu0 0.0
        %594 = vmatpush1.msra.mxu0 %v484
        %595 = vmatprep.subr.mxu0 0.0
        %596 = vmatpush1.msra.mxu0 %v487
        %597 = vmatprep.subr.mxu0 0.0
        %598 = vmatpush1.msra.mxu0 %v490
        %599 = vmatprep.subr.mxu0 0.0
        %600 = vmatpush1.msra.mxu0 %v493
        %601 = vmatprep.subr.mxu0 0.0
        %602 = vmatpush1.msra.mxu0 %v496
        %603 = vmatprep.subr.mxu0 0.0
        %604 = vmatpush1.msra.mxu0 %v499
        %605 = vmatprep.subr.mxu0 0.0
        %606 = vmatpush1.msra.mxu0 %v502
        %607 = vmatprep.subr.mxu0 0.0
        %608 = vmatpush1.msra.mxu0 %v505
        %609 = vmatprep.subr.mxu0 0.0
        %610 = vmatpush1.msra.mxu0 0.0
        %611 = vmatprep.subr.mxu0 0.0
        %612 = vmatpush1.msra.mxu0 0.0
        %613 = vmatprep.subr.mxu0 0.0
        %614 = vmatpush1.msra.mxu0 0.0
        %615 = vmatprep.subr.mxu0 0.0
        %616 = vmatpush1.msra.mxu0 0.0
        %617 = vmatprep.subr.mxu0 0.0
        %618 = vmatpush1.msra.mxu0 0.0
        %619 = vmatprep.subr.mxu0 0.0
        %620 = vmatpush1.msra.mxu0 0.0
        %621 = vmatprep.subr.mxu0 0.0
        %622 = vmatpush1.msra.mxu0 0.0
        %623 = vmatprep.subr.mxu0 0.0
        %624 = vmatpush1.msra.mxu0 0.0
        %625 = vmatprep.subr.mxu0 0.0
        %626 = vmatpush1.msra.mxu0 0.0
        %627 = vmatprep.subr.mxu0 0.0
        %628 = vmatpush1.msra.mxu0 0.0
        %629 = vmatprep.subr.mxu0 0.0
        %630 = vmatpush1.msra.mxu0 0.0
        %631 = vmatprep.subr.mxu0 0.0
        %632 = vmatpush1.msra.mxu0 0.0
        %633 = vmatprep.subr.mxu0 0.0
        %634 = vmatpush1.msra.mxu0 0.0
        %635 = vmatprep.subr.mxu0 0.0
        %636 = vmatpush1.msra.mxu0 0.0
        %637 = vmatprep.subr.mxu0 0.0
        %638 = vmatpush1.msra.mxu0 0.0
        %639 = vmatprep.subr.mxu0 0.0
        %640 = vmatpush1.msra.mxu0 0.0
        %641 = vmatprep.mubr.f32.mxu0 0.0
        %642 = vmatmul.mubr.f32.gmra.mrb[0].mxu0 %v457
        %v643 = vpop.f32.mrb[0].mxu0
        %v644 = vadd.f32 0.0, %v643
        %v645 = vpop.f32.mrb[0].mxu0
        %646 = vdwg.mxu0
        %v647 = vrot.slane %v573, 7
        %v648 = vsel %vm439, %v647, 0.0
        %v649 = vrot.slane %v644, 1
        %v650 = vsel %vm443, %v649, 0.0
        %v651 = vadd.f32 %v575, %v648
        %v652 = vadd.f32 %v651, %v650
        %v653 = vld [vmem:[%s4] sm:$0x1]
        %v655 = vlaneseq
        %v656 = vshrl.u32 %v655, 7
        %v657 = vsub.s32 0, %v656
        %v658 = vrot.slane %v653, %v657
        %v660 = vadd.f32 %v652, %v658
        %v661 = vmax.f32 %v660, 0.0
        %662 = vst [vmem:[%s268] sm:$0xff] %v661
        %s663 = sand.u32 %s141, 1
        %s664 = scalar_lea.sflag [#allocation5], %s663
        %s665 = sand.u32 %s141, 1
        %s666 = smul.addr %s665, 8
        %s667 = scalar_lea.vmem [#allocation9], %s666
        // Predicated region
        $region53: #{tpu_custom_call.1} parent=39 // pred_check
          %p668 = pneg %p151
        $region54: #{tpu_custom_call.1} parent=39 // pred_check_branch
          %670 = sbr.rel (%p668) target = $region56
        $region55: #{tpu_custom_call.1} parent=39 // pred_region
          %s672 = ssub.s32 128, 128
          %673 = vsyncadd %s664, %s672
          %s674 = smul.addr %s23, 128
          %s675 = scalar_lea.hbm %s5, %s674
          %s677 = sshll.u32 %s667, 4
          %s678 = int_to_ptr.vmem [resolvable:$true] %s677
          %680 = dma.vmem_to_hbm [thread:$0]  %s678, 128, %s675, %s664
        $region56: #{tpu_custom_call.1} parent=39 // pred_fallthru
          _
      $region40: #{tpu_custom_call.1} parent=5 // pred_fallthru
        _
      %p681 = scmp.le.s32.totalorder 2, %s18
      // Predicated region
      $region57: #{tpu_custom_call.1} parent=5 // pred_check
        %p682 = pneg %p681
      $region58: #{tpu_custom_call.1} parent=5 // pred_check_branch
        %684 = sbr.rel (%p682) target = $region60
      $region59: #{tpu_custom_call.1} parent=5 // pred_region
        %s685 = ssub.s32 %s18, 2
        // Predicated region
        $region61: #{tpu_custom_call.1} parent=59 // pred_check
          %p686 = pneg %p157
        $region62: #{tpu_custom_call.1} parent=59 // pred_check_branch
          %688 = sbr.rel (%p686) target = $region64
        $region63: #{tpu_custom_call.1} parent=59 // pred_region
          %s689 = sand.u32 %s142, 1
          %s690 = scalar_lea.sflag [#allocation5], %s689
          %s691 = sand.u32 %s142, 1
          %s692 = smul.addr %s691, 8
          %s693 = scalar_lea.vmem [#allocation9], %s692
          %694 = dma.done %s690, 128
        $region64: #{tpu_custom_call.1} parent=59 // pred_fallthru
          _
      $region60: #{tpu_custom_call.1} parent=5 // pred_fallthru
        _
    $region6: #{tpu_custom_call.1} parent=1 // loop_footer
      %s22 = sadd.s32 1, %s18
    $region7: #{tpu_custom_call.1} parent=1 // loop_footer_branch
      %17 = sbr.rel target = $region3
    $region8: #{tpu_custom_call.1} parent=1 // loop_exit
      _
    %695 = vsyncpa [#allocation4], 1
    %s696 = scalar_lea.sflag [#allocation4], 1
    %697 = vsyncpa %s696, 1
    %698 = vsyncpa [#allocation7], 1
    %699 = vsyncpa [#allocation5], 1
    %s700 = scalar_lea.sflag [#allocation5], 1
    %701 = vsyncpa %s700, 1

</llo_original>
